<compile_context>
chip_gen: v7x
topology: tpu7x:2x2x1
jax: 0.10.0
libtpu: 0.0.40
codegen_flags: <defaults>
</compile_context>

<pallas_src>
import numpy as np
import jax
import jax.numpy as jnp
from jax.experimental import pallas as pl
from jax.experimental.pallas import tpu as pltpu

# ----------------------- corpus / preprocessing (glue, mirrors PyTorch script) --------
corpusA = ['Ali go to the kitchen', 'Mary is in the bathroom',
           'James were in the bedroom', 'Ali dropped the milk',
           'Ali go to the studyroom']
train_sentences = [s.lower().split() for s in corpusA]
vocab = set(w for s in train_sentences for w in s)
# Original script references '<pad>'/'<unk>' but never adds them to the vocab
# (it would KeyError); we add them so the preprocessing pipeline actually runs.
vocab.update(['<pad>', '<unk>'])
ix_to_word = sorted(list(vocab))
word_to_ix = {w: i for i, w in enumerate(ix_to_word)}

V = len(vocab)          # vocab size (17 here)
W = 7                   # LinW output dim
d = 2                   # embedding dim
vector_size = 7         # padded sentence window length


def convert_token_to_indices(sentence, word_to_ix):
    return [word_to_ix[t] if t in word_to_ix else word_to_ix['<unk>'] for t in sentence]


def pad_window(sentence, vector_size, pad_token='<pad>'):
    window = [pad_token] * vector_size
    for i in range(len(sentence)):
        window[i + 1] = sentence[i]
    return window


def to_indices(sentence):
    return convert_token_to_indices(pad_window(sentence, vector_size), word_to_ix)


story_np = np.array([to_indices(s) for s in train_sentences], dtype=np.int32)          # [5, 7]
query_np = np.array(to_indices('Where is the milk?'.lower().split()), dtype=np.int32)  # [7]

N, L = story_np.shape

# ----------------------- padded kernel geometry ---------------------------------------
Np, Lp = 8, 8          # sentences (story rows + 1 query row) / tokens, sublane-friendly
Vp = 32                # per-table vocab pad (>= V + 1 so index V is a zero "null" row)
VT = 2 * Vp            # fused [embedA; embedB] vocab axis
dp = 8                 # embedding dim padded (small keeps table/weight DMA tiny)
Wp = 128               # LinW output dim padded to full lane width (dense vst)
PAD_IDX = V            # geometry-padding token index -> zero table row, contributes nothing


# ----------------------- Pallas kernel -------------------------------------------------
def emn_kernel(storyq_ref, embT_ref, w_ref, b_ref, out_ref):
    sq = storyq_ref[...]                                    # (Lp, Np, 1) int32

    # One vectorized one-hot compare over (token slot, row, fused vocab).
    v_iota = jax.lax.broadcasted_iota(jnp.int32, (Lp, Np, VT), 2)
    onehot = (sq == v_iota).astype(jnp.float32)             # (Lp, Np, VT)

    # Bag-of-words counts: balanced tree-sum over the leading token axis.
    # Leading dim = vreg index, so this is 7 plain VPU adds (no XLU reduction).
    slabs = [onehot[l] for l in range(Lp)]                  # each (Np, VT)
    while len(slabs) > 1:
        slabs = [slabs[i] + slabs[i + 1] for i in range(0, len(slabs), 2)]
    counts = slabs[0]                                       # (Np, VT)

    # Single MXU matmul against the fused [embedA; embedB] table:
    #   rows 0..N-1 -> a_embed[n] = sum_l embedA[story[n, l]]   (c_embed == a_embed)
    #   row  N      -> u          = sum_l embedB[query[l]]
    embed = jnp.dot(counts, embT_ref[...], preferred_element_type=jnp.float32)  # (Np, dp)

    u = embed[N:N + 1, :]                                   # (1, dp)
    inner = jnp.sum(embed * u, axis=1, keepdims=True)       # (Np, 1)
    row_ids = jax.lax.broadcasted_iota(jnp.int32, (Np, 1), 0)
    inner = jnp.where(row_ids < N, inner, -1e30)            # mask query row + pad rows

    # p = softmax over sentences
    m = jnp.max(inner, axis=0, keepdims=True)
    e = jnp.exp(inner - m)
    p = e / jnp.sum(e, axis=0, keepdims=True)               # (Np, 1); masked rows -> 0

    # ci = p @ c_embed ; o = sum(ci) ; ten3 = o + u
    ci = jnp.sum(p * embed, axis=0, keepdims=True)          # (1, dp)  (pad rows have p == 0)
    o = jnp.sum(ci, axis=1, keepdims=True)                  # (1, 1)   (pad cols are 0)
    ten3 = o + u                                            # (1, dp)

    # ten4 = LinW(ten3)
    ten4 = jnp.dot(ten3, w_ref[...], preferred_element_type=jnp.float32) + b_ref[...]  # (1, Wp)
    col_ids = jax.lax.broadcasted_iota(jnp.int32, (1, Wp), 1)
    ten4 = jnp.where(col_ids < W, ten4, -1e30)              # mask padded outputs

    # argmax(softmax(x)) == argmax(x): take argmax directly on the masked logits
    # (compare-to-max on raw logits + first-index via min).
    maxv = jnp.max(ten4, axis=1, keepdims=True)
    idx = jnp.where(ten4 == maxv, col_ids, Wp)
    out_ref[...] = jnp.min(idx, axis=1, keepdims=True)      # (1, 1) int32


# ----------------------- wrappers -------------------------------------------------------
def pad_params(embedA, embedB, lin_w, lin_b):
    """Pad/stack parameters ONCE (hoisted out of the per-call path)."""
    embT = (jnp.zeros((VT, dp), jnp.float32)
            .at[:V, :d].set(embedA)             # embedA half: rows [0, V)
            .at[Vp:Vp + V, :d].set(embedB))     # embedB half: rows [Vp, Vp+V)
    w_p = jnp.zeros((dp, Wp), jnp.float32).at[:d, :W].set(lin_w.T)
    b_p = jnp.zeros((1, Wp), jnp.float32).at[0, :W].set(lin_b)
    return embT, w_p, b_p


@jax.jit
def emn_forward(story, query, embT, w_p, b_p):
    # Fuse the query into the story index block: row N holds query indices offset
    # into the embedB half of the stacked table; geometry padding hits zero rows.
    fused = jnp.full((Np, Lp), PAD_IDX, jnp.int32)
    fused = fused.at[:N, :L].set(story)
    fused = fused.at[N, :L].set(query + Vp)
    storyq = fused.T[:, :, None]                # (Lp, Np, 1): tokens leading

    out = pl.pallas_call(
        emn_kernel,
        out_shape=jax.ShapeDtypeStruct((1, 1), jnp.int32),
        in_specs=[pl.BlockSpec(memory_space=pltpu.MemorySpace.VMEM)] * 4,
        out_specs=pl.BlockSpec(memory_space=pltpu.MemorySpace.VMEM),
    )(storyq, embT, w_p, b_p)
    return out[0, 0]
    # TODO(synk): for batched queries, add a parallel grid axis (shards across the
    # two v7x TensorCores and amortizes per-call overhead on v5e/v6e).


# ----------------------- pure-JAX reference (for verification) --------------------------
def emn_reference(story, query, embedA, embedB, lin_w, lin_b):
    a_embed = embedA[story].sum(axis=1)              # [N, d]
    u = embedB[query].sum(axis=0)                    # [d]
    inner = a_embed @ u                              # [N]
    p = jax.nn.softmax(inner)
    ci = p @ a_embed                                 # [d]  (c_embed == a_embed in module)
    o = ci.sum()
    ten3 = o + u                                     # [d]
    ten4 = ten3 @ lin_w.T + lin_b                    # [W]
    return jnp.argmax(jax.nn.softmax(ten4))


if __name__ == "__main__":
    # Deterministic parameter init (module defines embedA/embedB/embedC + Linear(d, W)).
    key = jax.random.PRNGKey(0)
    kA, kB, kC, kW, kb = jax.random.split(key, 5)
    embedA = jax.random.normal(kA, (V, d), jnp.float32)
    embedB = jax.random.normal(kB, (V, d), jnp.float32)
    embedC = jax.random.normal(kC, (V, d), jnp.float32)  # unused in forward (module uses a_embed twice)
    lin_w = jax.random.normal(kW, (W, d), jnp.float32) * 0.5
    lin_b = jax.random.normal(kb, (W,), jnp.float32) * 0.1

    story = jnp.asarray(story_np)   # [5, 7] int32
    query = jnp.asarray(query_np)   # [7]    int32

    embT, w_p, b_p = pad_params(embedA, embedB, lin_w, lin_b)  # padded once, reused per call

    result = emn_forward(story, query, embT, w_p, b_p)
    result = jax.block_until_ready(result)

    ref = emn_reference(story, query, embedA, embedB, lin_w, lin_b)
    assert int(result) == int(ref), f"mismatch: kernel={int(result)} ref={int(ref)}"
    print("KERNEL_OK")
</pallas_src>

<mosaic_0001>
module attributes {stable_mosaic.version = 11 : i64} {
  func.func @emn_kernel(%arg0: memref<8x8x1xi32, #tpu.memory_space<vmem>>, %arg1: memref<64x8xf32, #tpu.memory_space<vmem>>, %arg2: memref<8x128xf32, #tpu.memory_space<vmem>>, %arg3: memref<1x128xf32, #tpu.memory_space<vmem>>, %arg4: memref<1x1xi32, #tpu.memory_space<vmem>>) attributes {dimension_semantics = [], scalar_prefetch = 0 : i64, scratch_operands = 0 : i64, tpu.core_type = #tpu.core_type<tc>} {
    %c0 = arith.constant 0 : index
    %c0_0 = arith.constant 0 : index
    %c0_1 = arith.constant 0 : index
    %0 = vector.load %arg0[%c0, %c0_0, %c0_1] : memref<8x8x1xi32, #tpu.memory_space<vmem>>, vector<8x8x1xi32>
    %1 = tpu.iota {dimensions = array<i32: 2>} : vector<8x8x64xi32>
    %2 = vector.broadcast %0 : vector<8x8x1xi32> to vector<8x8x64xi32>
    %3 = arith.cmpi eq, %2, %1 : vector<8x8x64xi32>
    %4 = arith.extui %3 : vector<8x8x64xi1> to vector<8x8x64xi32>
    %5 = arith.sitofp %4 : vector<8x8x64xi32> to vector<8x8x64xf32>
    %6 = vector.extract_strided_slice %5 {offsets = [0, 0, 0], sizes = [1, 8, 64], strides = [1, 1, 1]} : vector<8x8x64xf32> to vector<1x8x64xf32>
    %7 = vector.shape_cast %6 : vector<1x8x64xf32> to vector<8x64xf32>
    %8 = vector.extract_strided_slice %5 {offsets = [1, 0, 0], sizes = [1, 8, 64], strides = [1, 1, 1]} : vector<8x8x64xf32> to vector<1x8x64xf32>
    %9 = vector.shape_cast %8 : vector<1x8x64xf32> to vector<8x64xf32>
    %10 = vector.extract_strided_slice %5 {offsets = [2, 0, 0], sizes = [1, 8, 64], strides = [1, 1, 1]} : vector<8x8x64xf32> to vector<1x8x64xf32>
    %11 = vector.shape_cast %10 : vector<1x8x64xf32> to vector<8x64xf32>
    %12 = vector.extract_strided_slice %5 {offsets = [3, 0, 0], sizes = [1, 8, 64], strides = [1, 1, 1]} : vector<8x8x64xf32> to vector<1x8x64xf32>
    %13 = vector.shape_cast %12 : vector<1x8x64xf32> to vector<8x64xf32>
    %14 = vector.extract_strided_slice %5 {offsets = [4, 0, 0], sizes = [1, 8, 64], strides = [1, 1, 1]} : vector<8x8x64xf32> to vector<1x8x64xf32>
    %15 = vector.shape_cast %14 : vector<1x8x64xf32> to vector<8x64xf32>
    %16 = vector.extract_strided_slice %5 {offsets = [5, 0, 0], sizes = [1, 8, 64], strides = [1, 1, 1]} : vector<8x8x64xf32> to vector<1x8x64xf32>
    %17 = vector.shape_cast %16 : vector<1x8x64xf32> to vector<8x64xf32>
    %18 = vector.extract_strided_slice %5 {offsets = [6, 0, 0], sizes = [1, 8, 64], strides = [1, 1, 1]} : vector<8x8x64xf32> to vector<1x8x64xf32>
    %19 = vector.shape_cast %18 : vector<1x8x64xf32> to vector<8x64xf32>
    %20 = vector.extract_strided_slice %5 {offsets = [7, 0, 0], sizes = [1, 8, 64], strides = [1, 1, 1]} : vector<8x8x64xf32> to vector<1x8x64xf32>
    %21 = vector.shape_cast %20 : vector<1x8x64xf32> to vector<8x64xf32>
    %22 = arith.addf %7, %9 : vector<8x64xf32>
    %23 = arith.addf %11, %13 : vector<8x64xf32>
    %24 = arith.addf %15, %17 : vector<8x64xf32>
    %25 = arith.addf %19, %21 : vector<8x64xf32>
    %26 = arith.addf %22, %23 : vector<8x64xf32>
    %27 = arith.addf %24, %25 : vector<8x64xf32>
    %28 = arith.addf %26, %27 : vector<8x64xf32>
    %c0_2 = arith.constant 0 : index
    %c0_3 = arith.constant 0 : index
    %29 = vector.load %arg1[%c0_2, %c0_3] : memref<64x8xf32, #tpu.memory_space<vmem>>, vector<64x8xf32>
    %cst = arith.constant dense<0.000000e+00> : vector<8x8xf32>
    %30 = tpu.matmul %28, %29, %cst {dimension_numbers = #tpu.dot_dimension_numbers<[1], [0], [0], [1], [0, 0, 1, 1], [], []>} : vector<8x64xf32>, vector<64x8xf32>, vector<8x8xf32> -> vector<8x8xf32>
    %31 = vector.extract_strided_slice %30 {offsets = [5, 0], sizes = [1, 8], strides = [1, 1]} : vector<8x8xf32> to vector<1x8xf32>
    %32 = vector.broadcast %31 : vector<1x8xf32> to vector<8x8xf32>
    %33 = arith.mulf %30, %32 : vector<8x8xf32>
    %cst_4 = arith.constant dense<0.000000e+00> : vector<8xf32>
    %34 = vector.multi_reduction <add>, %33, %cst_4 [1] : vector<8x8xf32> to vector<8xf32>
    %35 = vector.shape_cast %34 : vector<8xf32> to vector<8x1xf32>
    %36 = tpu.iota {dimensions = array<i32: 0>} : vector<8x1xi32>
    %c5_i32 = arith.constant 5 : i32
    %37 = vector.broadcast %c5_i32 : i32 to vector<8x1xi32>
    %38 = arith.cmpi slt, %36, %37 : vector<8x1xi32>
    %cst_5 = arith.constant -1.000000e+30 : f32
    %39 = vector.broadcast %cst_5 : f32 to vector<8x1xf32>
    %40 = arith.select %38, %35, %39 : vector<8x1xi1>, vector<8x1xf32>
    %cst_6 = arith.constant dense<0xFF800000> : vector<1xf32>
    %41 = vector.multi_reduction <maximumf>, %40, %cst_6 [0] : vector<8x1xf32> to vector<1xf32>
    %42 = vector.shape_cast %41 : vector<1xf32> to vector<1x1xf32>
    %43 = vector.broadcast %42 : vector<1x1xf32> to vector<8x1xf32>
    %44 = arith.subf %40, %43 : vector<8x1xf32>
    %45 = math.exp %44 : vector<8x1xf32>
    %cst_7 = arith.constant dense<0.000000e+00> : vector<1xf32>
    %46 = vector.multi_reduction <add>, %45, %cst_7 [0] : vector<8x1xf32> to vector<1xf32>
    %47 = vector.shape_cast %46 : vector<1xf32> to vector<1x1xf32>
    %48 = vector.broadcast %47 : vector<1x1xf32> to vector<8x1xf32>
    %49 = arith.divf %45, %48 : vector<8x1xf32>
    %50 = vector.broadcast %49 : vector<8x1xf32> to vector<8x8xf32>
    %51 = arith.mulf %50, %30 : vector<8x8xf32>
    %cst_8 = arith.constant dense<0.000000e+00> : vector<8xf32>
    %52 = vector.multi_reduction <add>, %51, %cst_8 [0] : vector<8x8xf32> to vector<8xf32>
    %53 = vector.shape_cast %52 : vector<8xf32> to vector<1x8xf32>
    %cst_9 = arith.constant dense<0.000000e+00> : vector<1xf32>
    %54 = vector.multi_reduction <add>, %53, %cst_9 [1] : vector<1x8xf32> to vector<1xf32>
    %55 = vector.shape_cast %54 : vector<1xf32> to vector<1x1xf32>
    %56 = vector.broadcast %55 : vector<1x1xf32> to vector<1x8xf32>
    %57 = arith.addf %56, %31 : vector<1x8xf32>
    %c0_10 = arith.constant 0 : index
    %c0_11 = arith.constant 0 : index
    %58 = vector.load %arg2[%c0_10, %c0_11] : memref<8x128xf32, #tpu.memory_space<vmem>>, vector<8x128xf32>
    %cst_12 = arith.constant dense<0.000000e+00> : vector<1x128xf32>
    %59 = tpu.matmul %57, %58, %cst_12 {dimension_numbers = #tpu.dot_dimension_numbers<[1], [0], [0], [1], [0, 0, 1, 1], [], []>} : vector<1x8xf32>, vector<8x128xf32>, vector<1x128xf32> -> vector<1x128xf32>
    %c0_13 = arith.constant 0 : index
    %c0_14 = arith.constant 0 : index
    %60 = vector.load %arg3[%c0_13, %c0_14] : memref<1x128xf32, #tpu.memory_space<vmem>>, vector<1x128xf32>
    %61 = arith.addf %59, %60 : vector<1x128xf32>
    %62 = tpu.iota {dimensions = array<i32: 1>} : vector<1x128xi32>
    %c7_i32 = arith.constant 7 : i32
    %63 = vector.broadcast %c7_i32 : i32 to vector<1x128xi32>
    %64 = arith.cmpi slt, %62, %63 : vector<1x128xi32>
    %cst_15 = arith.constant -1.000000e+30 : f32
    %65 = vector.broadcast %cst_15 : f32 to vector<1x128xf32>
    %66 = arith.select %64, %61, %65 : vector<1x128xi1>, vector<1x128xf32>
    %cst_16 = arith.constant dense<0xFF800000> : vector<1xf32>
    %67 = vector.multi_reduction <maximumf>, %66, %cst_16 [1] : vector<1x128xf32> to vector<1xf32>
    %68 = vector.shape_cast %67 : vector<1xf32> to vector<1x1xf32>
    %69 = vector.broadcast %68 : vector<1x1xf32> to vector<1x128xf32>
    %70 = arith.cmpf oeq, %66, %69 : vector<1x128xf32>
    %c128_i32 = arith.constant 128 : i32
    %71 = vector.broadcast %c128_i32 : i32 to vector<1x128xi32>
    %72 = arith.select %70, %62, %71 : vector<1x128xi1>, vector<1x128xi32>
    %cst_17 = arith.constant dense<2147483647> : vector<1xi32>
    %73 = vector.multi_reduction <minsi>, %72, %cst_17 [1] : vector<1x128xi32> to vector<1xi32>
    %74 = vector.shape_cast %73 : vector<1xi32> to vector<1x1xi32>
    %c0_18 = arith.constant 0 : index
    %c0_19 = arith.constant 0 : index
    %75 = vector.load %arg4[%c0_18, %c0_19] : memref<1x1xi32, #tpu.memory_space<vmem>>, vector<1x1xi32>
    tpu.vector_store %arg4[%c0_18, %c0_19], %74 {strides = array<i32>} : memref<1x1xi32, #tpu.memory_space<vmem>>, vector<1x1xi32>,
    return
  }
}

</mosaic_0001>

<llo_original>
// kernel: emn_forward.1
$region0: #{emn_forward.1}
  #allocation0 [shape = 'u32[]', space=smem, size = 0x4, offset = 0x4, fixed_abs, tag = 'smem constant byte address 0x4 - core index']
  #allocation1 [shape = 'u32[144,128]{1,0:T(1,128)}', space=vmem, size = 0x12000, scoped, tag = 'internal scratch']
  %s0 = inlined_call_operand.vmem [shape: s32[8,8,1], index: 0, kind: input, shape index: {}]
  %s1 = inlined_call_operand.vmem [shape: f32[64,8], index: 1, kind: input, shape index: {}]
  %s2 = inlined_call_operand.vmem [shape: f32[8,128], index: 2, kind: input, shape index: {}]
  %s3 = inlined_call_operand.vmem [shape: f32[1,128], index: 3, kind: input, shape index: {}]
  %s4 = inlined_call_operand.hbm [shape: s32[1,1], index: 4, kind: output, shape index: {}]
  %s5 = sld [smem:[#allocation0]]
  $region26: #{emn_forward.1} parent=0
    _
  %s7 = ssub.s32 1, %s5
  %s8 = scalar_select 0, %s7, %s5
  $region1: #{emn_forward.1} parent=0
    #allocation2 [shape = 'u8[512]{0}', space=vmem, size = 0x400, scoped, tag = 'output window, operand 0, single buffered']
    #allocation3 [shape = 's32[1]{0}', space=sflag, size = 0x4, scoped, tag = 'scoped memory for emn_forward.1']
    %9 = vsyncpa [#allocation3], 0
    // Predicated region
    $region2: #{emn_forward.1} parent=1 // pred_check
      _
    $region3: #{emn_forward.1} parent=1 // pred_check_branch
      %11 = sbr.rel (0) target = $region5
    $region4: #{emn_forward.1} parent=1 // pred_region
      _
    $region5: #{emn_forward.1} parent=1 // pred_fallthru
      _
    // Predicated region
    $region6: #{emn_forward.1} parent=1 // pred_check
      _
    $region7: #{emn_forward.1} parent=1 // pred_check_branch
      %13 = sbr.rel (0) target = $region9
    $region8: #{emn_forward.1} parent=1 // pred_region
      _
    $region9: #{emn_forward.1} parent=1 // pred_fallthru
      _
    // Predicated region
    $region10: #{emn_forward.1} parent=1 // pred_check
      _
    $region11: #{emn_forward.1} parent=1 // pred_check_branch
      %15 = sbr.rel (0) target = $region13
    $region12: #{emn_forward.1} parent=1 // pred_region
      _
    $region13: #{emn_forward.1} parent=1 // pred_fallthru
      _
    // Predicated region
    $region14: #{emn_forward.1} parent=1 // pred_check
      _
    $region15: #{emn_forward.1} parent=1 // pred_check_branch
      %17 = sbr.rel (0) target = $region17
    $region16: #{emn_forward.1} parent=1 // pred_region
      _
    $region17: #{emn_forward.1} parent=1 // pred_fallthru
      _
    %v18 = vld [vmem:[%s0] sm:$0xff]
    %v19 = vld [vmem:[%s0 + $0x8] sm:$0xff]
    %v20 = vld [vmem:[%s0 + $0x10] sm:$0xff]
    %v21 = vld [vmem:[%s0 + $0x18] sm:$0xff]
    %v22 = vld [vmem:[%s0 + $0x20] sm:$0xff]
    %v23 = vld [vmem:[%s0 + $0x28] sm:$0xff]
    %v24 = vld [vmem:[%s0 + $0x30] sm:$0xff]
    %v25 = vld [vmem:[%s0 + $0x38] sm:$0xff]
    %v26 = vlaneseq
    %v27 = vand.u32 %v26, 127
    %28 = vset.pattern.permute.xlu0 0
    %29 = vperm.xlu0 %28, %v18
    %v30 = vpop.permute.xlu0 %29
    %31 = vset.pattern.permute.xlu0 0
    %32 = vperm.xlu0 %31, %v19
    %v33 = vpop.permute.xlu0 %32
    %34 = vset.pattern.permute.xlu0 0
    %35 = vperm.xlu0 %34, %v20
    %v36 = vpop.permute.xlu0 %35
    %37 = vset.pattern.permute.xlu0 0
    %38 = vperm.xlu0 %37, %v21
    %v39 = vpop.permute.xlu0 %38
    %40 = vset.pattern.permute.xlu0 0
    %41 = vperm.xlu0 %40, %v22
    %v42 = vpop.permute.xlu0 %41
    %43 = vset.pattern.permute.xlu0 0
    %44 = vperm.xlu0 %43, %v23
    %v45 = vpop.permute.xlu0 %44
    %46 = vset.pattern.permute.xlu0 0
    %47 = vperm.xlu0 %46, %v24
    %v48 = vpop.permute.xlu0 %47
    %49 = vset.pattern.permute.xlu0 0
    %50 = vperm.xlu0 %49, %v25
    %v51 = vpop.permute.xlu0 %50
    %vm52 = vcmp.eq.s32.totalorder %v30, %v27
    %vm53 = vcmp.eq.s32.totalorder %v33, %v27
    %vm54 = vcmp.eq.s32.totalorder %v36, %v27
    %vm55 = vcmp.eq.s32.totalorder %v39, %v27
    %vm56 = vcmp.eq.s32.totalorder %v42, %v27
    %vm57 = vcmp.eq.s32.totalorder %v45, %v27
    %vm58 = vcmp.eq.s32.totalorder %v48, %v27
    %vm59 = vcmp.eq.s32.totalorder %v51, %v27
    %v60 = vsel %vm52, 1, 0
    %v61 = vsel %vm53, 1, 0
    %v62 = vsel %vm54, 1, 0
    %v63 = vsel %vm55, 1, 0
    %v64 = vsel %vm56, 1, 0
    %v65 = vsel %vm57, 1, 0
    %v66 = vsel %vm58, 1, 0
    %v67 = vsel %vm59, 1, 0
    %v68 = vcvt.s32.f32 %v60
    %v69 = vcvt.s32.f32 %v61
    %v70 = vcvt.s32.f32 %v62
    %v71 = vcvt.s32.f32 %v63
    %v72 = vcvt.s32.f32 %v64
    %v73 = vcvt.s32.f32 %v65
    %v74 = vcvt.s32.f32 %v66
    %v75 = vcvt.s32.f32 %v67
    %v76 = vadd.f32 %v68, %v69
    %v77 = vadd.f32 %v70, %v71
    %v78 = vadd.f32 %v72, %v73
    %v79 = vadd.f32 %v74, %v75
    %v80 = vadd.f32 %v76, %v77
    %v81 = vadd.f32 %v78, %v79
    %v82 = vadd.f32 %v80, %v81
    %v83 = vld [vmem:[%s1] sm:$0xff]
    %v84 = vld [vmem:[%s1 + $0x8] sm:$0xff]
    %v85 = vld [vmem:[%s1 + $0x10] sm:$0xff]
    %v86 = vld [vmem:[%s1 + $0x18] sm:$0xff]
    %v87 = vld [vmem:[%s1 + $0x20] sm:$0xff]
    %v88 = vld [vmem:[%s1 + $0x28] sm:$0xff]
    %v89 = vld [vmem:[%s1 + $0x30] sm:$0xff]
    %v90 = vld [vmem:[%s1 + $0x38] sm:$0xff]
    %vm91 = vcmask 523264
    %v93 = vsel %vm91, %v82, 0
    %95 = vmatprep.subr.mxu0 0.0
    %96 = vmatpush1.msra.mxu0 %v83
    %97 = vmatprep.subr.mxu0 0.0
    %98 = vmatpush1.msra.mxu0 %v84
    %99 = vmatprep.subr.mxu0 0.0
    %100 = vmatpush1.msra.mxu0 %v85
    %101 = vmatprep.subr.mxu0 0.0
    %102 = vmatpush1.msra.mxu0 %v86
    %103 = vmatprep.subr.mxu0 0.0
    %104 = vmatpush1.msra.mxu0 %v87
    %105 = vmatprep.subr.mxu0 0.0
    %106 = vmatpush1.msra.mxu0 %v88
    %107 = vmatprep.subr.mxu0 0.0
    %108 = vmatpush1.msra.mxu0 %v89
    %109 = vmatprep.subr.mxu0 0.0
    %110 = vmatpush1.msra.mxu0 %v90
    %111 = vmatprep.subr.mxu0 0.0
    %112 = vmatpush1.msra.mxu0 0.0
    %113 = vmatprep.subr.mxu0 0.0
    %114 = vmatpush1.msra.mxu0 0.0
    %115 = vmatprep.subr.mxu0 0.0
    %116 = vmatpush1.msra.mxu0 0.0
    %117 = vmatprep.subr.mxu0 0.0
    %118 = vmatpush1.msra.mxu0 0.0
    %119 = vmatprep.subr.mxu0 0.0
    %120 = vmatpush1.msra.mxu0 0.0
    %121 = vmatprep.subr.mxu0 0.0
    %122 = vmatpush1.msra.mxu0 0.0
    %123 = vmatprep.subr.mxu0 0.0
    %124 = vmatpush1.msra.mxu0 0.0
    %125 = vmatprep.subr.mxu0 0.0
    %126 = vmatpush1.msra.mxu0 0.0
    %127 = vmatprep.subr.mxu0 0.0
    %128 = vmatpush1.msra.mxu0 0.0
    %129 = vmatprep.subr.mxu0 0.0
    %130 = vmatpush1.msra.mxu0 0.0
    %131 = vmatprep.subr.mxu0 0.0
    %132 = vmatpush1.msra.mxu0 0.0
    %133 = vmatprep.subr.mxu0 0.0
    %134 = vmatpush1.msra.mxu0 0.0
    %135 = vmatprep.subr.mxu0 0.0
    %136 = vmatpush1.msra.mxu0 0.0
    %137 = vmatprep.subr.mxu0 0.0
    %138 = vmatpush1.msra.mxu0 0.0
    %139 = vmatprep.subr.mxu0 0.0
    %140 = vmatpush1.msra.mxu0 0.0
    %141 = vmatprep.subr.mxu0 0.0
    %142 = vmatpush1.msra.mxu0 0.0
    %143 = vmatprep.subr.mxu0 0.0
    %144 = vmatpush1.msra.mxu0 0.0
    %145 = vmatprep.subr.mxu0 0.0
    %146 = vmatpush1.msra.mxu0 0.0
    %147 = vmatprep.subr.mxu0 0.0
    %148 = vmatpush1.msra.mxu0 0.0
    %149 = vmatprep.subr.mxu0 0.0
    %150 = vmatpush1.msra.mxu0 0.0
    %151 = vmatprep.subr.mxu0 0.0
    %152 = vmatpush1.msra.mxu0 0.0
    %153 = vmatprep.subr.mxu0 0.0
    %154 = vmatpush1.msra.mxu0 0.0
    %155 = vmatprep.subr.mxu0 0.0
    %156 = vmatpush1.msra.mxu0 0.0
    %157 = vmatprep.subr.mxu0 0.0
    %158 = vmatpush1.msra.mxu0 0.0
    %159 = vmatprep.mubr.f32.mxu0 0.0
    %160 = vmatmul.mubr.f32.gmra.mrb[0].mxu0 %v93
    %v161 = vpop.f32.mrb[0].mxu0
    %v162 = vadd.f32 0.0, %v161
    %v163 = vpop.f32.mrb[0].mxu0
    %164 = vdwg.mxu0
    %v165 = vlaneseq
    %v166 = vshrl.u32 %v165, 7
    %v167 = vsub.s32 5, %v166
    %v168 = vrot.slane %v162, %v167
    %v169 = vmul.f32 %v162, %v168
    %vm170 = vcmask 64512
    %v171 = vsel %vm170, %v169, 0.0
    %172 = vadd.xlane.f32.xlu0 %v171
    %v173 = vpop.xlane.xlu0 %172
    %v174 = vlaneseq
    %v175 = vshrl.u32 %v174, 7
    %vm176 = vcmp.lt.s32.totalorder %v175, 5
    %v177 = vsel %vm176, %v173, -1e+30
    %v178 = vrot.slane %v177, 4
    %v179 = vmax.f32 %v177, %v178
    %v180 = vrot.slane %v179, 2
    %v181 = vmax.f32 %v179, %v180
    %v182 = vrot.slane %v181, 1
    %v183 = vmax.f32 %v181, %v182
    %v184 = vsub.f32 %v177, %v183
    %v185 = vmul.f32 %v184, 1.442695
    %v186 = vpow.pop %v185
    %v187 = vrot.slane %v186, 4
    %v188 = vadd.f32 %v186, %v187
    %v189 = vrot.slane %v188, 2
    %v190 = vadd.f32 %v188, %v189
    %v191 = vrot.slane %v190, 1
    %v192 = vadd.f32 %v190, %v191
    %v193 = vrcp.pop %v192
    %v194 = vmul.f32 %v186, %v193
    %v195 = vmul.f32 %v194, %v162
    %v196 = vsel %vm170, %v195, 0.0
    %v197 = vrot.slane %v196, 4
    %v198 = vadd.f32 %v196, %v197
    %v199 = vrot.slane %v198, 2
    %v200 = vadd.f32 %v198, %v199
    %v201 = vrot.slane %v200, 1
    %v202 = vadd.f32 %v200, %v201
    %v203 = vsel %vm170, %v202, 0.0
    %204 = vadd.xlane.f32.xlu0 %v203
    %v205 = vpop.xlane.xlu0 %204
    %v206 = vadd.f32 %v205, %v162
    %v207 = vld [vmem:[%s2] sm:$0xff]
    %v208 = vld [vmem:[%s3] sm:$0x1]
    %v210 = vrot.slane %v206, 5
    %v211 = vsel %vm170, %v210, 0
    %213 = vmatprep.subr.mxu0 0.0
    %214 = vmatpush1.msra.mxu0 %v207
    %215 = vmatprep.subr.mxu0 0.0
    %216 = vmatpush1.msra.mxu0 0.0
    %217 = vmatprep.subr.mxu0 0.0
    %218 = vmatpush1.msra.mxu0 0.0
    %219 = vmatprep.subr.mxu0 0.0
    %220 = vmatpush1.msra.mxu0 0.0
    %221 = vmatprep.subr.mxu0 0.0
    %222 = vmatpush1.msra.mxu0 0.0
    %223 = vmatprep.subr.mxu0 0.0
    %224 = vmatpush1.msra.mxu0 0.0
    %225 = vmatprep.subr.mxu0 0.0
    %226 = vmatpush1.msra.mxu0 0.0
    %227 = vmatprep.subr.mxu0 0.0
    %228 = vmatpush1.msra.mxu0 0.0
    %229 = vmatprep.subr.mxu0 0.0
    %230 = vmatpush1.msra.mxu0 0.0
    %231 = vmatprep.subr.mxu0 0.0
    %232 = vmatpush1.msra.mxu0 0.0
    %233 = vmatprep.subr.mxu0 0.0
    %234 = vmatpush1.msra.mxu0 0.0
    %235 = vmatprep.subr.mxu0 0.0
    %236 = vmatpush1.msra.mxu0 0.0
    %237 = vmatprep.subr.mxu0 0.0
    %238 = vmatpush1.msra.mxu0 0.0
    %239 = vmatprep.subr.mxu0 0.0
    %240 = vmatpush1.msra.mxu0 0.0
    %241 = vmatprep.subr.mxu0 0.0
    %242 = vmatpush1.msra.mxu0 0.0
    %243 = vmatprep.subr.mxu0 0.0
    %244 = vmatpush1.msra.mxu0 0.0
    %245 = vmatprep.subr.mxu0 0.0
    %246 = vmatpush1.msra.mxu0 0.0
    %247 = vmatprep.subr.mxu0 0.0
    %248 = vmatpush1.msra.mxu0 0.0
    %249 = vmatprep.subr.mxu0 0.0
    %250 = vmatpush1.msra.mxu0 0.0
    %251 = vmatprep.subr.mxu0 0.0
    %252 = vmatpush1.msra.mxu0 0.0
    %253 = vmatprep.subr.mxu0 0.0
    %254 = vmatpush1.msra.mxu0 0.0
    %255 = vmatprep.subr.mxu0 0.0
    %256 = vmatpush1.msra.mxu0 0.0
    %257 = vmatprep.subr.mxu0 0.0
    %258 = vmatpush1.msra.mxu0 0.0
    %259 = vmatprep.subr.mxu0 0.0
    %260 = vmatpush1.msra.mxu0 0.0
    %261 = vmatprep.subr.mxu0 0.0
    %262 = vmatpush1.msra.mxu0 0.0
    %263 = vmatprep.subr.mxu0 0.0
    %264 = vmatpush1.msra.mxu0 0.0
    %265 = vmatprep.subr.mxu0 0.0
    %266 = vmatpush1.msra.mxu0 0.0
    %267 = vmatprep.subr.mxu0 0.0
    %268 = vmatpush1.msra.mxu0 0.0
    %269 = vmatprep.subr.mxu0 0.0
    %270 = vmatpush1.msra.mxu0 0.0
    %271 = vmatprep.subr.mxu0 0.0
    %272 = vmatpush1.msra.mxu0 0.0
    %273 = vmatprep.subr.mxu0 0.0
    %274 = vmatpush1.msra.mxu0 0.0
    %275 = vmatprep.subr.mxu0 0.0
    %276 = vmatpush1.msra.mxu0 0.0
    %277 = vmatprep.mubr.f32.mxu0 0.0
    %278 = vmatmul.mubr.f32.gmra.mrb[0].mxu0 %v211
    %v279 = vpop.f32.mrb[0].mxu0
    %v280 = vadd.f32 %v208, %v279
    %v281 = vpop.f32.mrb[0].mxu0
    %282 = vdwg.mxu0
    %vm283 = vcmp.lt.s32.totalorder %v27, 7
    %v284 = vsel %vm283, %v280, -1e+30
    %vm285 = vcmask 1040384
    %v286 = vsel %vm285, %v284, -inf
    %287 = vmax.xlane.f32.xlu0 %v286
    %v288 = vpop.xlane.xlu0 %287
    %vm289 = vcmp.eq.f32.partialorder %v284, %v288
    %v290 = vsel %vm289, %v27, 128
    %v291 = vsel %vm285, %v290, 2147483647
    %v292 = vand.u32 %v291, 65535
    %v293 = vshra.s32 %v291, 16
    %v294 = vcvt.s32.f32 %v292
    %v295 = vcvt.s32.f32 %v293
    %296 = vmin.xlane.f32.xlu0 %v295
    %v297 = vpop.xlane.xlu0 %296
    %vm298 = vcmp.eq.f32.partialorder %v295, %v297
    %v299 = vsel %vm298, %v294, inf
    %300 = vmin.xlane.f32.xlu0 %v299
    %v301 = vpop.xlane.xlu0 %300
    %v302 = vcvt.f32.s32 %v301
    %v303 = vcvt.f32.s32 %v297
    %v304 = vshll.u32 %v303, 16
    %v305 = vadd.s32 %v304, %v302
    %vm306 = vcmask 0
    %307 = vst.msk [vmem:[#allocation2] sm:$0x1] %vm306, %v305
    // Predicated region
    $region18: #{emn_forward.1} parent=1 // pred_check
      _
    $region19: #{emn_forward.1} parent=1 // pred_check_branch
      %309 = sbr.rel (0) target = $region21
    $region20: #{emn_forward.1} parent=1 // pred_region
      %s311 = ssub.s32 16, 16
      %312 = vsyncadd [#allocation3], %s311
      %s314 = sshll.u32 [#allocation2], 4
      %s315 = int_to_ptr.vmem [resolvable:$true] %s314
      %317 = dma.vmem_to_hbm [thread:$0]  %s315, 16, %s4, [#allocation3]
    $region21: #{emn_forward.1} parent=1 // pred_fallthru
      _
    // Predicated region
    $region22: #{emn_forward.1} parent=1 // pred_check
      _
    $region23: #{emn_forward.1} parent=1 // pred_check_branch
      %319 = sbr.rel (0) target = $region25
    $region24: #{emn_forward.1} parent=1 // pred_region
      %320 = dma.done [#allocation3], 16
    $region25: #{emn_forward.1} parent=1 // pred_fallthru
      _
    %321 = vsyncpa [#allocation3], 1

</llo_original>
